<compile_context>
chip_gen: v7x
topology: tpu7x:2x2x1
jax: 0.10.0
libtpu: 0.0.40
codegen_flags: <defaults>
</compile_context>

<pallas_src>
import functools

import jax
import jax.numpy as jnp
from jax.experimental import pallas as pl
from jax.experimental.pallas import tpu as pltpu

INPUT_SIZE = 36
HIDDEN_SIZES = [64, 128, 64]
OUTPUT_SIZE = 53


def _round_up(n, m):
    return ((n + m - 1) // m) * m


def _mlp_kernel(x_ref,
                w1_ref, b1_ref,
                w2_ref, b2_ref,
                w3_ref, b3_ref,
                w4_ref, b4_ref,
                o_ref):
    # Layer 1: Linear + ReLU   (MXU matmul, VPU add/max)
    h = jnp.dot(x_ref[...], w1_ref[...], preferred_element_type=jnp.float32)
    h = jnp.maximum(h + b1_ref[...], 0.0)
    # Layer 2: Linear + ReLU
    h = jnp.dot(h, w2_ref[...], preferred_element_type=jnp.float32)
    h = jnp.maximum(h + b2_ref[...], 0.0)
    # Layer 3: Linear + ReLU
    h = jnp.dot(h, w3_ref[...], preferred_element_type=jnp.float32)
    h = jnp.maximum(h + b3_ref[...], 0.0)
    # Output layer: Linear (no activation)
    h = jnp.dot(h, w4_ref[...], preferred_element_type=jnp.float32)
    o_ref[...] = (h + b4_ref[...]).astype(o_ref.dtype)


def pack_params(params):
    """One-time prep: W (out,in) torch layout -> (in,out) f32 contiguous,
    b -> (1,out)."""
    packed = []
    for w, b in params:
        packed.append(jnp.asarray(w, dtype=jnp.float32).T)           # (in, out)
        packed.append(jnp.asarray(b, dtype=jnp.float32).reshape(1, -1))
    return tuple(packed)


@functools.partial(jax.jit, static_argnames=("tile_batch",))
def dnn_forward(x, packed_params, *, tile_batch=2048):
    """x: (batch, 36) float32.  packed_params: output of pack_params().
    Returns (batch, 53) float32."""
    batch = x.shape[0]

    # Batch tile: multiple of 8 (sublane), capped by tile_batch; the batch is
    # zero-padded up to a multiple of the tile (only if needed).
    tb = min(tile_batch, _round_up(batch, 8))
    tb = _round_up(tb, 8)
    batch_padded = _round_up(batch, tb)
    if batch_padded != batch:
        x = jnp.pad(x, ((0, batch_padded - batch), (0, 0)))
    grid = (batch_padded // tb,)

    # x / out are tiled over the batch grid; weights & biases use constant
    # index maps so they are fetched once and stay resident in VMEM.
    in_specs = [pl.BlockSpec((tb, INPUT_SIZE), lambda i: (i, 0))]
    for p in packed_params:
        in_specs.append(pl.BlockSpec(p.shape, lambda i: (0, 0)))

    sizes = [INPUT_SIZE] + HIDDEN_SIZES + [OUTPUT_SIZE]
    flops = 2 * batch_padded * sum(a * b for a, b in zip(sizes[:-1], sizes[1:]))
    param_bytes = sum(int(p.size) * 4 for p in packed_params)
    bytes_accessed = batch_padded * (INPUT_SIZE + OUTPUT_SIZE) * 4 + param_bytes

    out = pl.pallas_call(
        _mlp_kernel,
        out_shape=jax.ShapeDtypeStruct((batch_padded, OUTPUT_SIZE), jnp.float32),
        grid=grid,
        in_specs=in_specs,
        out_specs=pl.BlockSpec((tb, OUTPUT_SIZE), lambda i: (i, 0)),
        compiler_params=pltpu.CompilerParams(
            dimension_semantics=("parallel",)),
        cost_estimate=pl.CostEstimate(
            flops=int(flops), transcendentals=0,
            bytes_accessed=int(bytes_accessed)),
    )(x, *packed_params)

    return out[:batch]


def init_params(key):
    """Deterministic init matching torch.nn.Linear shapes: W is (out, in)."""
    sizes = [INPUT_SIZE] + HIDDEN_SIZES + [OUTPUT_SIZE]
    params = []
    for i in range(len(sizes) - 1):
        in_f, out_f = sizes[i], sizes[i + 1]
        key, kw, kb = jax.random.split(key, 3)
        bound = 1.0 / jnp.sqrt(jnp.float32(in_f))
        w = jax.random.uniform(kw, (out_f, in_f), jnp.float32, -bound, bound)
        b = jax.random.uniform(kb, (out_f,), jnp.float32, -bound, bound)
        params.append((w, b))
    return params


def reference_forward(x, params):
    """Plain-JAX reference mirroring the PyTorch nn.Sequential."""
    h = x
    n = len(params)
    for i, (w, b) in enumerate(params):
        h = h @ w.T + b
        if i < n - 1:
            h = jnp.maximum(h, 0.0)
    return h


if __name__ == "__main__":
    key = jax.random.PRNGKey(0)
    key_p, key_x1, key_x2 = jax.random.split(key, 3)

    params = init_params(key_p)
    packed = pack_params(params)  # one-time packing, outside the hot path

    # Small-batch check (single grid step, no padding).
    batch = 16
    x = jax.random.normal(key_x1, (batch, INPUT_SIZE), dtype=jnp.float32)
    out = jax.block_until_ready(dnn_forward(x, packed))
    ref = reference_forward(x, params)
    assert out.shape == (batch, OUTPUT_SIZE), out.shape
    assert jnp.allclose(out, ref, atol=1e-4, rtol=1e-4), (
        float(jnp.max(jnp.abs(out - ref))))

    # Multi-tile check: batch not a multiple of the tile (exercises padding,
    # the batch grid, resident weights, and the row slice-back).
    batch2 = 200
    x2 = jax.random.normal(key_x2, (batch2, INPUT_SIZE), dtype=jnp.float32)
    out2 = jax.block_until_ready(dnn_forward(x2, packed, tile_batch=64))
    ref2 = reference_forward(x2, params)
    assert out2.shape == (batch2, OUTPUT_SIZE), out2.shape
    assert jnp.allclose(out2, ref2, atol=1e-4, rtol=1e-4), (
        float(jnp.max(jnp.abs(out2 - ref2))))

    print("KERNEL_OK")
</pallas_src>

<mosaic_0001>
module attributes {stable_mosaic.version = 11 : i64} {
  func.func @_mlp_kernel(%arg0: i32, %arg1: memref<16x36xf32, #tpu.memory_space<vmem>>, %arg2: memref<36x64xf32, #tpu.memory_space<vmem>>, %arg3: memref<1x64xf32, #tpu.memory_space<vmem>>, %arg4: memref<64x128xf32, #tpu.memory_space<vmem>>, %arg5: memref<1x128xf32, #tpu.memory_space<vmem>>, %arg6: memref<128x64xf32, #tpu.memory_space<vmem>>, %arg7: memref<1x64xf32, #tpu.memory_space<vmem>>, %arg8: memref<64x53xf32, #tpu.memory_space<vmem>>, %arg9: memref<1x53xf32, #tpu.memory_space<vmem>>, %arg10: memref<16x53xf32, #tpu.memory_space<vmem>>) attributes {dimension_semantics = [#tpu.dimension_semantics<parallel>], iteration_bounds = array<i64: 1>, scalar_prefetch = 0 : i64, scratch_operands = 0 : i64, tpu.core_type = #tpu.core_type<tc>, window_params = [{transform_indices = @transform_0, window_bounds = array<i64: 16, 36>}, {pipeline_mode = #tpu.pipeline_mode<synchronous>, transform_indices = @transform_1, window_bounds = array<i64: 36, 64>}, {pipeline_mode = #tpu.pipeline_mode<synchronous>, transform_indices = @transform_2, window_bounds = array<i64: 1, 64>}, {pipeline_mode = #tpu.pipeline_mode<synchronous>, transform_indices = @transform_3, window_bounds = array<i64: 64, 128>}, {pipeline_mode = #tpu.pipeline_mode<synchronous>, transform_indices = @transform_4, window_bounds = array<i64: 1, 128>}, {pipeline_mode = #tpu.pipeline_mode<synchronous>, transform_indices = @transform_5, window_bounds = array<i64: 128, 64>}, {pipeline_mode = #tpu.pipeline_mode<synchronous>, transform_indices = @transform_6, window_bounds = array<i64: 1, 64>}, {pipeline_mode = #tpu.pipeline_mode<synchronous>, transform_indices = @transform_7, window_bounds = array<i64: 64, 53>}, {pipeline_mode = #tpu.pipeline_mode<synchronous>, transform_indices = @transform_8, window_bounds = array<i64: 1, 53>}, {transform_indices = @transform_9, window_bounds = array<i64: 16, 53>}]} {
    %c0 = arith.constant 0 : index
    %c0_0 = arith.constant 0 : index
    %0 = vector.load %arg1[%c0, %c0_0] : memref<16x36xf32, #tpu.memory_space<vmem>>, vector<16x36xf32>
    %c0_1 = arith.constant 0 : index
    %c0_2 = arith.constant 0 : index
    %1 = vector.load %arg2[%c0_1, %c0_2] : memref<36x64xf32, #tpu.memory_space<vmem>>, vector<36x64xf32>
    %cst = arith.constant dense<0.000000e+00> : vector<16x64xf32>
    %2 = tpu.matmul %0, %1, %cst {dimension_numbers = #tpu.dot_dimension_numbers<[1], [0], [0], [1], [0, 0, 1, 1], [], []>} : vector<16x36xf32>, vector<36x64xf32>, vector<16x64xf32> -> vector<16x64xf32>
    %c0_3 = arith.constant 0 : index
    %c0_4 = arith.constant 0 : index
    %3 = vector.load %arg3[%c0_3, %c0_4] : memref<1x64xf32, #tpu.memory_space<vmem>>, vector<1x64xf32>
    %4 = vector.broadcast %3 : vector<1x64xf32> to vector<16x64xf32>
    %5 = arith.addf %2, %4 : vector<16x64xf32>
    %cst_5 = arith.constant 0.000000e+00 : f32
    %6 = vector.broadcast %cst_5 : f32 to vector<16x64xf32>
    %7 = arith.maximumf %5, %6 : vector<16x64xf32>
    %c0_6 = arith.constant 0 : index
    %c0_7 = arith.constant 0 : index
    %8 = vector.load %arg4[%c0_6, %c0_7] : memref<64x128xf32, #tpu.memory_space<vmem>>, vector<64x128xf32>
    %cst_8 = arith.constant dense<0.000000e+00> : vector<16x128xf32>
    %9 = tpu.matmul %7, %8, %cst_8 {dimension_numbers = #tpu.dot_dimension_numbers<[1], [0], [0], [1], [0, 0, 1, 1], [], []>} : vector<16x64xf32>, vector<64x128xf32>, vector<16x128xf32> -> vector<16x128xf32>
    %c0_9 = arith.constant 0 : index
    %c0_10 = arith.constant 0 : index
    %10 = vector.load %arg5[%c0_9, %c0_10] : memref<1x128xf32, #tpu.memory_space<vmem>>, vector<1x128xf32>
    %11 = vector.broadcast %10 : vector<1x128xf32> to vector<16x128xf32>
    %12 = arith.addf %9, %11 : vector<16x128xf32>
    %cst_11 = arith.constant 0.000000e+00 : f32
    %13 = vector.broadcast %cst_11 : f32 to vector<16x128xf32>
    %14 = arith.maximumf %12, %13 : vector<16x128xf32>
    %c0_12 = arith.constant 0 : index
    %c0_13 = arith.constant 0 : index
    %15 = vector.load %arg6[%c0_12, %c0_13] : memref<128x64xf32, #tpu.memory_space<vmem>>, vector<128x64xf32>
    %cst_14 = arith.constant dense<0.000000e+00> : vector<16x64xf32>
    %16 = tpu.matmul %14, %15, %cst_14 {dimension_numbers = #tpu.dot_dimension_numbers<[1], [0], [0], [1], [0, 0, 1, 1], [], []>} : vector<16x128xf32>, vector<128x64xf32>, vector<16x64xf32> -> vector<16x64xf32>
    %c0_15 = arith.constant 0 : index
    %c0_16 = arith.constant 0 : index
    %17 = vector.load %arg7[%c0_15, %c0_16] : memref<1x64xf32, #tpu.memory_space<vmem>>, vector<1x64xf32>
    %18 = vector.broadcast %17 : vector<1x64xf32> to vector<16x64xf32>
    %19 = arith.addf %16, %18 : vector<16x64xf32>
    %cst_17 = arith.constant 0.000000e+00 : f32
    %20 = vector.broadcast %cst_17 : f32 to vector<16x64xf32>
    %21 = arith.maximumf %19, %20 : vector<16x64xf32>
    %c0_18 = arith.constant 0 : index
    %c0_19 = arith.constant 0 : index
    %22 = vector.load %arg8[%c0_18, %c0_19] : memref<64x53xf32, #tpu.memory_space<vmem>>, vector<64x53xf32>
    %cst_20 = arith.constant dense<0.000000e+00> : vector<16x53xf32>
    %23 = tpu.matmul %21, %22, %cst_20 {dimension_numbers = #tpu.dot_dimension_numbers<[1], [0], [0], [1], [0, 0, 1, 1], [], []>} : vector<16x64xf32>, vector<64x53xf32>, vector<16x53xf32> -> vector<16x53xf32>
    %c0_21 = arith.constant 0 : index
    %c0_22 = arith.constant 0 : index
    %24 = vector.load %arg9[%c0_21, %c0_22] : memref<1x53xf32, #tpu.memory_space<vmem>>, vector<1x53xf32>
    %25 = vector.broadcast %24 : vector<1x53xf32> to vector<16x53xf32>
    %26 = arith.addf %23, %25 : vector<16x53xf32>
    %c0_23 = arith.constant 0 : index
    %c0_24 = arith.constant 0 : index
    %27 = vector.load %arg10[%c0_23, %c0_24] : memref<16x53xf32, #tpu.memory_space<vmem>>, vector<16x53xf32>
    tpu.vector_store %arg10[%c0_23, %c0_24], %26 {strides = array<i32>} : memref<16x53xf32, #tpu.memory_space<vmem>>, vector<16x53xf32>,
    return
  }
  func.func @transform_0(%arg0: i32) -> (i32, i32) {
    %c0_i32 = arith.constant 0 : i32
    %c0_i32_0 = arith.constant 0 : i32
    return %arg0, %c0_i32 : i32, i32
  }
  func.func @transform_1(%arg0: i32) -> (i32, i32) {
    %c0_i32 = arith.constant 0 : i32
    %c0_i32_0 = arith.constant 0 : i32
    %c0_i32_1 = arith.constant 0 : i32
    return %c0_i32, %c0_i32_0 : i32, i32
  }
  func.func @transform_2(%arg0: i32) -> (i32, i32) {
    %c0_i32 = arith.constant 0 : i32
    %c0_i32_0 = arith.constant 0 : i32
    %c0_i32_1 = arith.constant 0 : i32
    return %c0_i32, %c0_i32_0 : i32, i32
  }
  func.func @transform_3(%arg0: i32) -> (i32, i32) {
    %c0_i32 = arith.constant 0 : i32
    %c0_i32_0 = arith.constant 0 : i32
    %c0_i32_1 = arith.constant 0 : i32
    return %c0_i32, %c0_i32_0 : i32, i32
  }
  func.func @transform_4(%arg0: i32) -> (i32, i32) {
    %c0_i32 = arith.constant 0 : i32
    %c0_i32_0 = arith.constant 0 : i32
    %c0_i32_1 = arith.constant 0 : i32
    return %c0_i32, %c0_i32_0 : i32, i32
  }
  func.func @transform_5(%arg0: i32) -> (i32, i32) {
    %c0_i32 = arith.constant 0 : i32
    %c0_i32_0 = arith.constant 0 : i32
    %c0_i32_1 = arith.constant 0 : i32
    return %c0_i32, %c0_i32_0 : i32, i32
  }
  func.func @transform_6(%arg0: i32) -> (i32, i32) {
    %c0_i32 = arith.constant 0 : i32
    %c0_i32_0 = arith.constant 0 : i32
    %c0_i32_1 = arith.constant 0 : i32
    return %c0_i32, %c0_i32_0 : i32, i32
  }
  func.func @transform_7(%arg0: i32) -> (i32, i32) {
    %c0_i32 = arith.constant 0 : i32
    %c0_i32_0 = arith.constant 0 : i32
    %c0_i32_1 = arith.constant 0 : i32
    return %c0_i32, %c0_i32_0 : i32, i32
  }
  func.func @transform_8(%arg0: i32) -> (i32, i32) {
    %c0_i32 = arith.constant 0 : i32
    %c0_i32_0 = arith.constant 0 : i32
    %c0_i32_1 = arith.constant 0 : i32
    return %c0_i32, %c0_i32_0 : i32, i32
  }
  func.func @transform_9(%arg0: i32) -> (i32, i32) {
    %c0_i32 = arith.constant 0 : i32
    %c0_i32_0 = arith.constant 0 : i32
    return %arg0, %c0_i32 : i32, i32
  }
}

</mosaic_0001>

<llo_original>
// kernel: dnn_forward.1
$region0: #{dnn_forward.1}
  #allocation0 [shape = 'u32[]', space=smem, size = 0x4, offset = 0x4, fixed_abs, tag = 'smem constant byte address 0x4 - core index']
  #allocation1 [shape = 'u32[144,128]{1,0:T(1,128)}', space=vmem, size = 0x12000, scoped, tag = 'internal scratch']
  %s0 = inlined_call_operand.vmem [shape: f32[16,36], index: 0, kind: input, shape index: {}]
  %s1 = inlined_call_operand.vmem [shape: f32[36,64], index: 1, kind: input, shape index: {}]
  %s2 = inlined_call_operand.vmem [shape: f32[1,64], index: 2, kind: input, shape index: {}]
  %s3 = inlined_call_operand.vmem [shape: f32[64,128], index: 3, kind: input, shape index: {}]
  %s4 = inlined_call_operand.vmem [shape: f32[1,128], index: 4, kind: input, shape index: {}]
  %s5 = inlined_call_operand.vmem [shape: f32[128,64], index: 5, kind: input, shape index: {}]
  %s6 = inlined_call_operand.vmem [shape: f32[1,64], index: 6, kind: input, shape index: {}]
  %s7 = inlined_call_operand.vmem [shape: f32[64,53], index: 7, kind: input, shape index: {}]
  %s8 = inlined_call_operand.vmem [shape: f32[1,53], index: 8, kind: input, shape index: {}]
  %s9 = inlined_call_operand.hbm [shape: f32[16,53], index: 9, kind: output, shape index: {}]
  %s10 = sld [smem:[#allocation0]]
  $region46: #{dnn_forward.1} parent=0
    _
  %s12 = ssub.s32 1, %s10
  %s13 = scalar_select 0, %s12, %s10
  $region1: #{dnn_forward.1} parent=0
    #allocation2 [shape = 'u8[8192]{0}', space=vmem, size = 0x2000, scoped, tag = 'output window, operand 0, single buffered']
    #allocation3 [shape = 's32[1]{0}', space=sflag, size = 0x4, scoped, tag = 'scoped memory for dnn_forward.1']
    %14 = vsyncpa [#allocation3], 0
    // Predicated region
    $region2: #{dnn_forward.1} parent=1 // pred_check
      _
    $region3: #{dnn_forward.1} parent=1 // pred_check_branch
      %16 = sbr.rel (0) target = $region5
    $region4: #{dnn_forward.1} parent=1 // pred_region
      _
    $region5: #{dnn_forward.1} parent=1 // pred_fallthru
      _
    // Predicated region
    $region6: #{dnn_forward.1} parent=1 // pred_check
      _
    $region7: #{dnn_forward.1} parent=1 // pred_check_branch
      %18 = sbr.rel (0) target = $region9
    $region8: #{dnn_forward.1} parent=1 // pred_region
      _
    $region9: #{dnn_forward.1} parent=1 // pred_fallthru
      _
    // Predicated region
    $region10: #{dnn_forward.1} parent=1 // pred_check
      _
    $region11: #{dnn_forward.1} parent=1 // pred_check_branch
      %20 = sbr.rel (0) target = $region13
    $region12: #{dnn_forward.1} parent=1 // pred_region
      _
    $region13: #{dnn_forward.1} parent=1 // pred_fallthru
      _
    // Predicated region
    $region14: #{dnn_forward.1} parent=1 // pred_check
      _
    $region15: #{dnn_forward.1} parent=1 // pred_check_branch
      %22 = sbr.rel (0) target = $region17
    $region16: #{dnn_forward.1} parent=1 // pred_region
      _
    $region17: #{dnn_forward.1} parent=1 // pred_fallthru
      _
    // Predicated region
    $region18: #{dnn_forward.1} parent=1 // pred_check
      _
    $region19: #{dnn_forward.1} parent=1 // pred_check_branch
      %24 = sbr.rel (0) target = $region21
    $region20: #{dnn_forward.1} parent=1 // pred_region
      _
    $region21: #{dnn_forward.1} parent=1 // pred_fallthru
      _
    // Predicated region
    $region22: #{dnn_forward.1} parent=1 // pred_check
      _
    $region23: #{dnn_forward.1} parent=1 // pred_check_branch
      %26 = sbr.rel (0) target = $region25
    $region24: #{dnn_forward.1} parent=1 // pred_region
      _
    $region25: #{dnn_forward.1} parent=1 // pred_fallthru
      _
    // Predicated region
    $region26: #{dnn_forward.1} parent=1 // pred_check
      _
    $region27: #{dnn_forward.1} parent=1 // pred_check_branch
      %28 = sbr.rel (0) target = $region29
    $region28: #{dnn_forward.1} parent=1 // pred_region
      _
    $region29: #{dnn_forward.1} parent=1 // pred_fallthru
      _
    // Predicated region
    $region30: #{dnn_forward.1} parent=1 // pred_check
      _
    $region31: #{dnn_forward.1} parent=1 // pred_check_branch
      %30 = sbr.rel (0) target = $region33
    $region32: #{dnn_forward.1} parent=1 // pred_region
      _
    $region33: #{dnn_forward.1} parent=1 // pred_fallthru
      _
    // Predicated region
    $region34: #{dnn_forward.1} parent=1 // pred_check
      _
    $region35: #{dnn_forward.1} parent=1 // pred_check_branch
      %32 = sbr.rel (0) target = $region37
    $region36: #{dnn_forward.1} parent=1 // pred_region
      _
    $region37: #{dnn_forward.1} parent=1 // pred_fallthru
      _
    %v33 = vld [vmem:[%s0] sm:$0xff]
    %v34 = vld [vmem:[%s0 + $0x8] sm:$0xff]
    %v35 = vld [vmem:[%s1] sm:$0xff]
    %v36 = vld [vmem:[%s1 + $0x8] sm:$0xff]
    %v37 = vld [vmem:[%s1 + $0x10] sm:$0xff]
    %v38 = vld [vmem:[%s1 + $0x18] sm:$0xff]
    %v39 = vld [vmem:[%s1 + $0x20] sm:$0xf]
    %v40 = vld [vmem:[%s2] sm:$0x1]
    %v42 = vlaneseq
    %v43 = vshrl.u32 %v42, 7
    %v44 = vsub.s32 0, %v43
    %v45 = vrot.slane %v40, %v44
    %vm47 = vcmask 293888
    %v49 = vsel %vm47, %v33, 0
    %v52 = vsel %vm47, %v34, 0
    %vm54 = vcmask 1043456
    %v56 = vsel %vm54, %v39, 0
    %58 = vmatprep.subr.mxu0 0.0
    %59 = vmatpush1.msra.mxu0 %v35
    %60 = vmatprep.subr.mxu0 0.0
    %61 = vmatpush1.msra.mxu0 %v36
    %62 = vmatprep.subr.mxu0 0.0
    %63 = vmatpush1.msra.mxu0 %v37
    %64 = vmatprep.subr.mxu0 0.0
    %65 = vmatpush1.msra.mxu0 %v38
    %66 = vmatprep.subr.mxu0 0.0
    %67 = vmatpush1.msra.mxu0 %v56
    %68 = vmatprep.subr.mxu0 0.0
    %69 = vmatpush1.msra.mxu0 0.0
    %70 = vmatprep.subr.mxu0 0.0
    %71 = vmatpush1.msra.mxu0 0.0
    %72 = vmatprep.subr.mxu0 0.0
    %73 = vmatpush1.msra.mxu0 0.0
    %74 = vmatprep.subr.mxu0 0.0
    %75 = vmatpush1.msra.mxu0 0.0
    %76 = vmatprep.subr.mxu0 0.0
    %77 = vmatpush1.msra.mxu0 0.0
    %78 = vmatprep.subr.mxu0 0.0
    %79 = vmatpush1.msra.mxu0 0.0
    %80 = vmatprep.subr.mxu0 0.0
    %81 = vmatpush1.msra.mxu0 0.0
    %82 = vmatprep.subr.mxu0 0.0
    %83 = vmatpush1.msra.mxu0 0.0
    %84 = vmatprep.subr.mxu0 0.0
    %85 = vmatpush1.msra.mxu0 0.0
    %86 = vmatprep.subr.mxu0 0.0
    %87 = vmatpush1.msra.mxu0 0.0
    %88 = vmatprep.subr.mxu0 0.0
    %89 = vmatpush1.msra.mxu0 0.0
    %90 = vmatprep.subr.mxu0 0.0
    %91 = vmatpush1.msra.mxu0 0.0
    %92 = vmatprep.subr.mxu0 0.0
    %93 = vmatpush1.msra.mxu0 0.0
    %94 = vmatprep.subr.mxu0 0.0
    %95 = vmatpush1.msra.mxu0 0.0
    %96 = vmatprep.subr.mxu0 0.0
    %97 = vmatpush1.msra.mxu0 0.0
    %98 = vmatprep.subr.mxu0 0.0
    %99 = vmatpush1.msra.mxu0 0.0
    %100 = vmatprep.subr.mxu0 0.0
    %101 = vmatpush1.msra.mxu0 0.0
    %102 = vmatprep.subr.mxu0 0.0
    %103 = vmatpush1.msra.mxu0 0.0
    %104 = vmatprep.subr.mxu0 0.0
    %105 = vmatpush1.msra.mxu0 0.0
    %106 = vmatprep.subr.mxu0 0.0
    %107 = vmatpush1.msra.mxu0 0.0
    %108 = vmatprep.subr.mxu0 0.0
    %109 = vmatpush1.msra.mxu0 0.0
    %110 = vmatprep.subr.mxu0 0.0
    %111 = vmatpush1.msra.mxu0 0.0
    %112 = vmatprep.subr.mxu0 0.0
    %113 = vmatpush1.msra.mxu0 0.0
    %114 = vmatprep.subr.mxu0 0.0
    %115 = vmatpush1.msra.mxu0 0.0
    %116 = vmatprep.subr.mxu0 0.0
    %117 = vmatpush1.msra.mxu0 0.0
    %118 = vmatprep.subr.mxu0 0.0
    %119 = vmatpush1.msra.mxu0 0.0
    %120 = vmatprep.subr.mxu0 0.0
    %121 = vmatpush1.msra.mxu0 0.0
    %122 = vmatprep.mubr.f32.mxu0 0.0
    %123 = vmatmul.mubr.f32.gmra.mrb[0].mxu0 %v49
    %v124 = vpop.f32.mrb[0].mxu0
    %v125 = vadd.f32 %v45, %v124
    %v126 = vpop.f32.mrb[0].mxu0
    %127 = vmatprep.mubr.f32.mxu0 0.0
    %128 = vmatmul.mubr.f32.gmra.mrb[0].mxu0 %v52
    %v129 = vpop.f32.mrb[0].mxu0
    %v130 = vadd.f32 %v45, %v129
    %v131 = vpop.f32.mrb[0].mxu0
    %132 = vdwg.mxu0
    %v133 = vmax.f32 %v125, 0.0
    %v134 = vmax.f32 %v130, 0.0
    %v135 = vld [vmem:[%s3] sm:$0xff]
    %v136 = vld [vmem:[%s3 + $0x8] sm:$0xff]
    %v137 = vld [vmem:[%s3 + $0x10] sm:$0xff]
    %v138 = vld [vmem:[%s3 + $0x18] sm:$0xff]
    %v139 = vld [vmem:[%s3 + $0x20] sm:$0xff]
    %v140 = vld [vmem:[%s3 + $0x28] sm:$0xff]
    %v141 = vld [vmem:[%s3 + $0x30] sm:$0xff]
    %v142 = vld [vmem:[%s3 + $0x38] sm:$0xff]
    %v143 = vld [vmem:[%s4] sm:$0x1]
    %v145 = vlaneseq
    %v146 = vshrl.u32 %v145, 7
    %v147 = vsub.s32 0, %v146
    %v148 = vrot.slane %v143, %v147
    %vm150 = vcmask 523264
    %v152 = vsel %vm150, %v133, 0
    %v155 = vsel %vm150, %v134, 0
    %157 = vmatprep.subr.mxu0 0.0
    %158 = vmatpush1.msra.mxu0 %v135
    %159 = vmatprep.subr.mxu0 0.0
    %160 = vmatpush1.msra.mxu0 %v136
    %161 = vmatprep.subr.mxu0 0.0
    %162 = vmatpush1.msra.mxu0 %v137
    %163 = vmatprep.subr.mxu0 0.0
    %164 = vmatpush1.msra.mxu0 %v138
    %165 = vmatprep.subr.mxu0 0.0
    %166 = vmatpush1.msra.mxu0 %v139
    %167 = vmatprep.subr.mxu0 0.0
    %168 = vmatpush1.msra.mxu0 %v140
    %169 = vmatprep.subr.mxu0 0.0
    %170 = vmatpush1.msra.mxu0 %v141
    %171 = vmatprep.subr.mxu0 0.0
    %172 = vmatpush1.msra.mxu0 %v142
    %173 = vmatprep.subr.mxu0 0.0
    %174 = vmatpush1.msra.mxu0 0.0
    %175 = vmatprep.subr.mxu0 0.0
    %176 = vmatpush1.msra.mxu0 0.0
    %177 = vmatprep.subr.mxu0 0.0
    %178 = vmatpush1.msra.mxu0 0.0
    %179 = vmatprep.subr.mxu0 0.0
    %180 = vmatpush1.msra.mxu0 0.0
    %181 = vmatprep.subr.mxu0 0.0
    %182 = vmatpush1.msra.mxu0 0.0
    %183 = vmatprep.subr.mxu0 0.0
    %184 = vmatpush1.msra.mxu0 0.0
    %185 = vmatprep.subr.mxu0 0.0
    %186 = vmatpush1.msra.mxu0 0.0
    %187 = vmatprep.subr.mxu0 0.0
    %188 = vmatpush1.msra.mxu0 0.0
    %189 = vmatprep.subr.mxu0 0.0
    %190 = vmatpush1.msra.mxu0 0.0
    %191 = vmatprep.subr.mxu0 0.0
    %192 = vmatpush1.msra.mxu0 0.0
    %193 = vmatprep.subr.mxu0 0.0
    %194 = vmatpush1.msra.mxu0 0.0
    %195 = vmatprep.subr.mxu0 0.0
    %196 = vmatpush1.msra.mxu0 0.0
    %197 = vmatprep.subr.mxu0 0.0
    %198 = vmatpush1.msra.mxu0 0.0
    %199 = vmatprep.subr.mxu0 0.0
    %200 = vmatpush1.msra.mxu0 0.0
    %201 = vmatprep.subr.mxu0 0.0
    %202 = vmatpush1.msra.mxu0 0.0
    %203 = vmatprep.subr.mxu0 0.0
    %204 = vmatpush1.msra.mxu0 0.0
    %205 = vmatprep.subr.mxu0 0.0
    %206 = vmatpush1.msra.mxu0 0.0
    %207 = vmatprep.subr.mxu0 0.0
    %208 = vmatpush1.msra.mxu0 0.0
    %209 = vmatprep.subr.mxu0 0.0
    %210 = vmatpush1.msra.mxu0 0.0
    %211 = vmatprep.subr.mxu0 0.0
    %212 = vmatpush1.msra.mxu0 0.0
    %213 = vmatprep.subr.mxu0 0.0
    %214 = vmatpush1.msra.mxu0 0.0
    %215 = vmatprep.subr.mxu0 0.0
    %216 = vmatpush1.msra.mxu0 0.0
    %217 = vmatprep.subr.mxu0 0.0
    %218 = vmatpush1.msra.mxu0 0.0
    %219 = vmatprep.subr.mxu0 0.0
    %220 = vmatpush1.msra.mxu0 0.0
    %221 = vmatprep.mubr.f32.mxu0 0.0
    %222 = vmatmul.mubr.f32.gmra.mrb[0].mxu0 %v152
    %v223 = vpop.f32.mrb[0].mxu0
    %v224 = vadd.f32 %v148, %v223
    %v225 = vpop.f32.mrb[0].mxu0
    %226 = vmatprep.mubr.f32.mxu0 0.0
    %227 = vmatmul.mubr.f32.gmra.mrb[0].mxu0 %v155
    %v228 = vpop.f32.mrb[0].mxu0
    %v229 = vadd.f32 %v148, %v228
    %v230 = vpop.f32.mrb[0].mxu0
    %231 = vdwg.mxu0
    %v232 = vmax.f32 %v224, 0.0
    %v233 = vmax.f32 %v229, 0.0
    %v234 = vld [vmem:[%s5] sm:$0xff]
    %v235 = vld [vmem:[%s5 + $0x8] sm:$0xff]
    %v236 = vld [vmem:[%s5 + $0x10] sm:$0xff]
    %v237 = vld [vmem:[%s5 + $0x18] sm:$0xff]
    %v238 = vld [vmem:[%s5 + $0x20] sm:$0xff]
    %v239 = vld [vmem:[%s5 + $0x28] sm:$0xff]
    %v240 = vld [vmem:[%s5 + $0x30] sm:$0xff]
    %v241 = vld [vmem:[%s5 + $0x38] sm:$0xff]
    %v242 = vld [vmem:[%s5 + $0x40] sm:$0xff]
    %v243 = vld [vmem:[%s5 + $0x48] sm:$0xff]
    %v244 = vld [vmem:[%s5 + $0x50] sm:$0xff]
    %v245 = vld [vmem:[%s5 + $0x58] sm:$0xff]
    %v246 = vld [vmem:[%s5 + $0x60] sm:$0xff]
    %v247 = vld [vmem:[%s5 + $0x68] sm:$0xff]
    %v248 = vld [vmem:[%s5 + $0x70] sm:$0xff]
    %v249 = vld [vmem:[%s5 + $0x78] sm:$0xff]
    %v250 = vld [vmem:[%s6] sm:$0x1]
    %v252 = vlaneseq
    %v253 = vshrl.u32 %v252, 7
    %v254 = vsub.s32 0, %v253
    %v255 = vrot.slane %v250, %v254
    %257 = vmatprep.subr.mxu0 0.0
    %258 = vmatpush1.msra.mxu0 %v234
    %259 = vmatprep.subr.mxu0 0.0
    %260 = vmatpush1.msra.mxu0 %v235
    %261 = vmatprep.subr.mxu0 0.0
    %262 = vmatpush1.msra.mxu0 %v236
    %263 = vmatprep.subr.mxu0 0.0
    %264 = vmatpush1.msra.mxu0 %v237
    %265 = vmatprep.subr.mxu0 0.0
    %266 = vmatpush1.msra.mxu0 %v238
    %267 = vmatprep.subr.mxu0 0.0
    %268 = vmatpush1.msra.mxu0 %v239
    %269 = vmatprep.subr.mxu0 0.0
    %270 = vmatpush1.msra.mxu0 %v240
    %271 = vmatprep.subr.mxu0 0.0
    %272 = vmatpush1.msra.mxu0 %v241
    %273 = vmatprep.subr.mxu0 0.0
    %274 = vmatpush1.msra.mxu0 %v242
    %275 = vmatprep.subr.mxu0 0.0
    %276 = vmatpush1.msra.mxu0 %v243
    %277 = vmatprep.subr.mxu0 0.0
    %278 = vmatpush1.msra.mxu0 %v244
    %279 = vmatprep.subr.mxu0 0.0
    %280 = vmatpush1.msra.mxu0 %v245
    %281 = vmatprep.subr.mxu0 0.0
    %282 = vmatpush1.msra.mxu0 %v246
    %283 = vmatprep.subr.mxu0 0.0
    %284 = vmatpush1.msra.mxu0 %v247
    %285 = vmatprep.subr.mxu0 0.0
    %286 = vmatpush1.msra.mxu0 %v248
    %287 = vmatprep.subr.mxu0 0.0
    %288 = vmatpush1.msra.mxu0 %v249
    %289 = vmatprep.subr.mxu0 0.0
    %290 = vmatpush1.msra.mxu0 0.0
    %291 = vmatprep.subr.mxu0 0.0
    %292 = vmatpush1.msra.mxu0 0.0
    %293 = vmatprep.subr.mxu0 0.0
    %294 = vmatpush1.msra.mxu0 0.0
    %295 = vmatprep.subr.mxu0 0.0
    %296 = vmatpush1.msra.mxu0 0.0
    %297 = vmatprep.subr.mxu0 0.0
    %298 = vmatpush1.msra.mxu0 0.0
    %299 = vmatprep.subr.mxu0 0.0
    %300 = vmatpush1.msra.mxu0 0.0
    %301 = vmatprep.subr.mxu0 0.0
    %302 = vmatpush1.msra.mxu0 0.0
    %303 = vmatprep.subr.mxu0 0.0
    %304 = vmatpush1.msra.mxu0 0.0
    %305 = vmatprep.subr.mxu0 0.0
    %306 = vmatpush1.msra.mxu0 0.0
    %307 = vmatprep.subr.mxu0 0.0
    %308 = vmatpush1.msra.mxu0 0.0
    %309 = vmatprep.subr.mxu0 0.0
    %310 = vmatpush1.msra.mxu0 0.0
    %311 = vmatprep.subr.mxu0 0.0
    %312 = vmatpush1.msra.mxu0 0.0
    %313 = vmatprep.subr.mxu0 0.0
    %314 = vmatpush1.msra.mxu0 0.0
    %315 = vmatprep.subr.mxu0 0.0
    %316 = vmatpush1.msra.mxu0 0.0
    %317 = vmatprep.subr.mxu0 0.0
    %318 = vmatpush1.msra.mxu0 0.0
    %319 = vmatprep.subr.mxu0 0.0
    %320 = vmatpush1.msra.mxu0 0.0
    %321 = vmatprep.mubr.f32.mxu0 0.0
    %322 = vmatmul.mubr.f32.gmra.mrb[0].mxu0 %v232
    %v323 = vpop.f32.mrb[0].mxu0
    %v324 = vadd.f32 %v255, %v323
    %v325 = vpop.f32.mrb[0].mxu0
    %326 = vmatprep.mubr.f32.mxu0 0.0
    %327 = vmatmul.mubr.f32.gmra.mrb[0].mxu0 %v233
    %v328 = vpop.f32.mrb[0].mxu0
    %v329 = vadd.f32 %v255, %v328
    %v330 = vpop.f32.mrb[0].mxu0
    %331 = vdwg.mxu0
    %v332 = vmax.f32 %v324, 0.0
    %v333 = vmax.f32 %v329, 0.0
    %v334 = vld [vmem:[%s7] sm:$0xff]
    %v335 = vld [vmem:[%s7 + $0x8] sm:$0xff]
    %v336 = vld [vmem:[%s7 + $0x10] sm:$0xff]
    %v337 = vld [vmem:[%s7 + $0x18] sm:$0xff]
    %v338 = vld [vmem:[%s7 + $0x20] sm:$0xff]
    %v339 = vld [vmem:[%s7 + $0x28] sm:$0xff]
    %v340 = vld [vmem:[%s7 + $0x30] sm:$0xff]
    %v341 = vld [vmem:[%s7 + $0x38] sm:$0xff]
    %v342 = vld [vmem:[%s8] sm:$0x1]
    %v344 = vlaneseq
    %v345 = vshrl.u32 %v344, 7
    %v346 = vsub.s32 0, %v345
    %v347 = vrot.slane %v342, %v346
    %v350 = vsel %vm150, %v332, 0
    %v353 = vsel %vm150, %v333, 0
    %355 = vmatprep.subr.mxu0 0.0
    %356 = vmatpush1.msra.mxu0 %v334
    %357 = vmatprep.subr.mxu0 0.0
    %358 = vmatpush1.msra.mxu0 %v335
    %359 = vmatprep.subr.mxu0 0.0
    %360 = vmatpush1.msra.mxu0 %v336
    %361 = vmatprep.subr.mxu0 0.0
    %362 = vmatpush1.msra.mxu0 %v337
    %363 = vmatprep.subr.mxu0 0.0
    %364 = vmatpush1.msra.mxu0 %v338
    %365 = vmatprep.subr.mxu0 0.0
    %366 = vmatpush1.msra.mxu0 %v339
    %367 = vmatprep.subr.mxu0 0.0
    %368 = vmatpush1.msra.mxu0 %v340
    %369 = vmatprep.subr.mxu0 0.0
    %370 = vmatpush1.msra.mxu0 %v341
    %371 = vmatprep.subr.mxu0 0.0
    %372 = vmatpush1.msra.mxu0 0.0
    %373 = vmatprep.subr.mxu0 0.0
    %374 = vmatpush1.msra.mxu0 0.0
    %375 = vmatprep.subr.mxu0 0.0
    %376 = vmatpush1.msra.mxu0 0.0
    %377 = vmatprep.subr.mxu0 0.0
    %378 = vmatpush1.msra.mxu0 0.0
    %379 = vmatprep.subr.mxu0 0.0
    %380 = vmatpush1.msra.mxu0 0.0
    %381 = vmatprep.subr.mxu0 0.0
    %382 = vmatpush1.msra.mxu0 0.0
    %383 = vmatprep.subr.mxu0 0.0
    %384 = vmatpush1.msra.mxu0 0.0
    %385 = vmatprep.subr.mxu0 0.0
    %386 = vmatpush1.msra.mxu0 0.0
    %387 = vmatprep.subr.mxu0 0.0
    %388 = vmatpush1.msra.mxu0 0.0
    %389 = vmatprep.subr.mxu0 0.0
    %390 = vmatpush1.msra.mxu0 0.0
    %391 = vmatprep.subr.mxu0 0.0
    %392 = vmatpush1.msra.mxu0 0.0
    %393 = vmatprep.subr.mxu0 0.0
    %394 = vmatpush1.msra.mxu0 0.0
    %395 = vmatprep.subr.mxu0 0.0
    %396 = vmatpush1.msra.mxu0 0.0
    %397 = vmatprep.subr.mxu0 0.0
    %398 = vmatpush1.msra.mxu0 0.0
    %399 = vmatprep.subr.mxu0 0.0
    %400 = vmatpush1.msra.mxu0 0.0
    %401 = vmatprep.subr.mxu0 0.0
    %402 = vmatpush1.msra.mxu0 0.0
    %403 = vmatprep.subr.mxu0 0.0
    %404 = vmatpush1.msra.mxu0 0.0
    %405 = vmatprep.subr.mxu0 0.0
    %406 = vmatpush1.msra.mxu0 0.0
    %407 = vmatprep.subr.mxu0 0.0
    %408 = vmatpush1.msra.mxu0 0.0
    %409 = vmatprep.subr.mxu0 0.0
    %410 = vmatpush1.msra.mxu0 0.0
    %411 = vmatprep.subr.mxu0 0.0
    %412 = vmatpush1.msra.mxu0 0.0
    %413 = vmatprep.subr.mxu0 0.0
    %414 = vmatpush1.msra.mxu0 0.0
    %415 = vmatprep.subr.mxu0 0.0
    %416 = vmatpush1.msra.mxu0 0.0
    %417 = vmatprep.subr.mxu0 0.0
    %418 = vmatpush1.msra.mxu0 0.0
    %419 = vmatprep.mubr.f32.mxu0 0.0
    %420 = vmatmul.mubr.f32.gmra.mrb[0].mxu0 %v350
    %v421 = vpop.f32.mrb[0].mxu0
    %v422 = vadd.f32 %v347, %v421
    %v423 = vpop.f32.mrb[0].mxu0
    %424 = vmatprep.mubr.f32.mxu0 0.0
    %425 = vmatmul.mubr.f32.gmra.mrb[0].mxu0 %v353
    %v426 = vpop.f32.mrb[0].mxu0
    %v427 = vadd.f32 %v347, %v426
    %v428 = vpop.f32.mrb[0].mxu0
    %429 = vdwg.mxu0
    %vm430 = vcmask 433152
    %431 = vst.msk [vmem:[#allocation2] sm:$0xff] %vm430, %v422
    %432 = vst.msk [vmem:[#allocation2 + $0x8] sm:$0xff] %vm430, %v427
    // Predicated region
    $region38: #{dnn_forward.1} parent=1 // pred_check
      _
    $region39: #{dnn_forward.1} parent=1 // pred_check_branch
      %434 = sbr.rel (0) target = $region41
    $region40: #{dnn_forward.1} parent=1 // pred_region
      %s436 = ssub.s32 256, 256
      %437 = vsyncadd [#allocation3], %s436
      %s438 = sshll.u32 [#allocation2], 4
      %s439 = int_to_ptr.vmem [resolvable:$true] %s438
      %444 = dma.vmem_to_hbm [thread:$0]  %s439, 256, %s9, [#allocation3], 128, 128, 8
    $region41: #{dnn_forward.1} parent=1 // pred_fallthru
      _
    // Predicated region
    $region42: #{dnn_forward.1} parent=1 // pred_check
      _
    $region43: #{dnn_forward.1} parent=1 // pred_check_branch
      %446 = sbr.rel (0) target = $region45
    $region44: #{dnn_forward.1} parent=1 // pred_region
      %447 = dma.done [#allocation3], 256
    $region45: #{dnn_forward.1} parent=1 // pred_fallthru
      _
    %448 = vsyncpa [#allocation3], 1

</llo_original>
